<compile_context>
chip_gen: v5e
topology: v5e:2x2
jax: 0.10.0
libtpu: 0.0.40
codegen_flags: <defaults>
</compile_context>

<pallas_src>
import functools

import jax
import jax.numpy as jnp
from jax.experimental import pallas as pl
from jax.experimental.pallas import tpu as pltpu


def _round_up(x, m):
    return ((x + m - 1) // m) * m


def _conv4x4s2_lrelu_kernel(xt_ref, w_ref, o_ref, *, wo1, tr, pack):
    """One (batch, row-tile) grid step.

    xt_ref : (4*Cin, Lt)    phase-split, channels-major, row-major-fused input chunk
                            (tr+2 halo'ed rows of Wo1 cols per phase, zero-padded to Lt)
    w_ref  : (Cout, 16*Cin) packed weights, K ordered (ro, co, ph, pw, cin)
    o_ref  : (Cout, Lo)     lane-dense output chunk; first tr*Wo1 lanes are live
    """
    m = tr * wo1
    # The 16 conv taps collapse to 4 lane-offset windows of the same block: window
    # (ro, co) starts at ro*Wo1 + co and holds, at lane i*Wo1 + j, the tap value
    # x_phase[ph, pw, row i+ro, col j+co] for every (ph, pw, cin) sublane.  The
    # j == Wo lane of each row is garbage and is never stored/used.
    pieces = [xt_ref[:, ro * wo1 + co: ro * wo1 + co + m]
              for ro in (0, 1) for co in (0, 1)]
    if pack:
        # Small Cin: a single MXU matmul with K = 16*Cin (replaces 16 K=Cin matmuls
        # plus 15 f32 accumulate adds).
        rhs = jnp.concatenate(pieces, axis=0)                     # (16*Cin, M)
        acc = jnp.dot(w_ref[...], rhs, preferred_element_type=jnp.float32)
    else:
        # Large Cin: 4 matmuls with K = 4*Cin each (already MXU-dense), no concat copy.
        k4 = w_ref.shape[1] // 4
        acc = jnp.zeros((o_ref.shape[0], m), jnp.float32)
        for g, piece in enumerate(pieces):
            acc = acc + jnp.dot(w_ref[:, g * k4:(g + 1) * k4], piece,
                                preferred_element_type=jnp.float32)
    y = jnp.where(acc >= 0, acc, 0.2 * acc)                       # fused LeakyReLU(0.2)
    o_ref[:, :m] = y.astype(o_ref.dtype)                          # lane-dense store, no transpose


def _vmem_capacity_bytes():
    try:
        cap = getattr(pltpu.get_tpu_info(), "vmem_capacity_bytes", None)
        if cap:
            return int(cap)
    except Exception:
        pass
    return 64 * 1024 * 1024            # conservative default (v7x per-core VMEM)


def _estimate_vmem(tr, wo1, cin, cout, in_bytes, out_bytes):
    """Per-step VMEM footprint: double-buffered in/out blocks, resident packed
    weights, packed RHS slab, f32 accumulator, window-staging slack — including
    sublane (8) / lane (128) padding."""
    sub = lambda n: _round_up(n, 8)
    m = _round_up(tr * wo1, 128)
    lt = _round_up((tr + 2) * wo1, 128)
    lo = _round_up(tr * wo1, 128)
    k16 = 16 * cin
    use = 2 * sub(4 * cin) * lt * in_bytes                    # input blocks (x2 buffers)
    use += 2 * sub(cout) * lo * out_bytes                     # output blocks (x2 buffers)
    use += 2 * sub(cout) * _round_up(k16, 128) * in_bytes     # resident packed weights
    use += sub(k16) * m * in_bytes                            # packed RHS slab
    use += sub(cout) * m * 4                                  # f32 accumulator
    use += sub(4 * cin) * m * in_bytes                        # window staging slack
    return use


def _pick_row_tile(batch, ho, wo1, cin, cout, in_bytes, out_bytes, budget):
    """Largest row tile fitting the VMEM budget; keep >= 2 parallel grid steps
    (v7x has 2 TensorCores) when the batch axis alone does not provide them."""
    tr = 1
    for cand in range(1, ho + 1):
        if _estimate_vmem(cand, wo1, cin, cout, in_bytes, out_bytes) <= budget:
            tr = cand
    if ho > 1 and batch * (-(-ho // tr)) < 2:
        tr = -(-ho // 2)
    return tr


def downsample(x, weight, *, compute_dtype=jnp.bfloat16, row_block=None):
    """x: (B, Cin, H, W), weight: (Cout, Cin, 4, 4) -> LeakyReLU_0.2(conv 4x4, s2, p1)."""
    B, Cin, H, W = x.shape
    Cout = weight.shape[0]
    Ho, Wo = H // 2, W // 2
    Wo1 = Wo + 1
    in_bytes = jnp.dtype(compute_dtype).itemsize
    out_bytes = jnp.dtype(x.dtype).itemsize

    vmem_cap = _vmem_capacity_bytes()
    budget = int(0.70 * vmem_cap)       # ~45 MiB on v7x (64 MiB), ~90 MiB on v5e/v6e (128 MiB)

    if row_block is not None:
        tr = max(1, min(int(row_block), Ho))
    else:
        tr = _pick_row_tile(B, Ho, Wo1, Cin, Cout, in_bytes, out_bytes, budget)
    n_t = -(-Ho // tr)
    Ho_pad = n_t * tr

    R = Ho_pad + 2                              # phase rows materialized (2-row halo)
    M = tr * Wo1                                # live output lanes per tile
    Lt = _round_up((tr + 2) * Wo1, 128)         # input chunk lanes  (128-multiple)
    Lo = _round_up(M, 128)                      # output chunk lanes (unmasked 128-lane stores)

    est = _estimate_vmem(tr, Wo1, Cin, Cout, in_bytes, out_bytes)
    vmem_limit = int(min(0.9 * vmem_cap, max(budget, 1.5 * est)))

    # ---- wrapper glue (one pass over the input, no HBM im2col) ----
    # x_pad[u, v] = x[u-1, v-1]; extra zero rows/cols so every phase/halo read exists.
    xp = jnp.pad(x, ((0, 0), (0, 0), (1, 2 * R - 1 - H), (1, 2 * Wo1 - 1 - W)))
    # phase split, channels-major: xq[b, (ph*2+pw)*Cin + c, r, s] = x_pad[b, c, 2r+ph, 2s+pw]
    xq = (xp.reshape(B, Cin, R, 2, Wo1, 2)
            .transpose(0, 3, 5, 1, 2, 4)
            .reshape(B, 4 * Cin, R, Wo1))
    # row-tile chunks with a 2-row halo, spatial fused row-major, lane-padded to Lt
    rows = (jnp.arange(n_t)[:, None] * tr + jnp.arange(tr + 2)[None, :]).reshape(-1)
    xt = jnp.take(xq, rows, axis=2).reshape(B, 4 * Cin, n_t, (tr + 2) * Wo1)
    if Lt > (tr + 2) * Wo1:
        xt = jnp.pad(xt, ((0, 0), (0, 0), (0, 0), (0, Lt - (tr + 2) * Wo1)))
    xt = xt.reshape(B, 4 * Cin, n_t * Lt).astype(compute_dtype)

    # packed weights: (Cout, 16*Cin), K ordered (ro, co, ph, pw, cin)
    wp = (weight.reshape(Cout, Cin, 2, 2, 2, 2)    # (Cout, c, ro, ph, co, pw)
                .transpose(0, 2, 4, 3, 5, 1)       # (Cout, ro, co, ph, pw, c)
                .reshape(Cout, 16 * Cin)
                .astype(compute_dtype))

    kernel = functools.partial(_conv4x4s2_lrelu_kernel,
                               wo1=Wo1, tr=tr, pack=(Cin <= 32))

    out = pl.pallas_call(
        kernel,
        out_shape=jax.ShapeDtypeStruct((B, Cout, n_t * Lo), x.dtype),
        grid_spec=pltpu.PrefetchScalarGridSpec(
            num_scalar_prefetch=0,
            grid=(B, n_t),
            in_specs=[
                pl.BlockSpec((None, 4 * Cin, Lt), lambda b, t: (b, 0, t)),
                pl.BlockSpec((Cout, 16 * Cin), lambda b, t: (0, 0)),
            ],
            out_specs=pl.BlockSpec((None, Cout, Lo), lambda b, t: (b, 0, t)),
        ),
        compiler_params=pltpu.CompilerParams(
            dimension_semantics=("parallel", "parallel"),
            vmem_limit_bytes=vmem_limit,
        ),
    )(xt, wp)

    # strip lane padding, the per-row garbage column, and Ho padding
    out = out.reshape(B, Cout, n_t, Lo)[:, :, :, :M]
    out = out.reshape(B, Cout, n_t, tr, Wo1)[:, :, :, :, :Wo]
    out = out.reshape(B, Cout, Ho_pad, Wo)
    if Ho_pad != Ho:
        out = out[:, :, :Ho, :]
    return out


def _reference(x, weight):
    # Pure-JAX reference: conv k=4, s=2, p=1 (no bias) + LeakyReLU(0.2).
    y = jax.lax.conv_general_dilated(
        x, weight, window_strides=(2, 2), padding=((1, 1), (1, 1)),
        dimension_numbers=("NCHW", "OIHW", "NCHW"))
    return jnp.where(y >= 0, y, 0.2 * y)


if __name__ == "__main__":
    key = jax.random.PRNGKey(0)
    kx, kw0, kx2, kw2, kx3, kw3 = jax.random.split(key, 6)

    # Primary shape: DownSample(4, 8) on (2, 4, 16, 16) — packed-K MXU path.
    B, Cin, Cout, H, W = 2, 4, 8, 16, 16
    x = jax.random.normal(kx, (B, Cin, H, W), dtype=jnp.float32)
    weight = 0.02 * jax.random.normal(kw0, (Cout, Cin, 4, 4), dtype=jnp.float32)

    fwd = jax.jit(lambda a, b: downsample(a, b))          # bf16 streams, f32 accumulate
    y = jax.block_until_ready(fwd(x, weight))
    y_ref = _reference(x, weight)
    assert y.shape == (B, Cout, H // 2, W // 2), y.shape
    assert jnp.allclose(y, y_ref, atol=2e-2, rtol=2e-2), \
        float(jnp.max(jnp.abs(y - y_ref)))

    # Exact-path check with f32 streams.
    y32 = jax.block_until_ready(downsample(x, weight, compute_dtype=jnp.float32))
    assert jnp.allclose(y32, y_ref, atol=1e-3, rtol=1e-3), \
        float(jnp.max(jnp.abs(y32 - y_ref)))

    # Multi-row-tile path: explicit row_block, odd H, Ho padding.
    x2 = jax.random.normal(kx2, (1, 8, 15, 64), dtype=jnp.float32)
    w2 = 0.02 * jax.random.normal(kw2, (16, 8, 4, 4), dtype=jnp.float32)
    y2 = jax.block_until_ready(
        downsample(x2, w2, compute_dtype=jnp.float32, row_block=4))
    y2_ref = _reference(x2, w2)
    assert y2.shape == y2_ref.shape, (y2.shape, y2_ref.shape)
    assert jnp.allclose(y2, y2_ref, atol=1e-3, rtol=1e-3), \
        float(jnp.max(jnp.abs(y2 - y2_ref)))

    # Large-Cin path (4x K=4*Cin matmuls), odd H/W, B=1 (exercises >=2-step grid cap).
    x3 = jax.random.normal(kx3, (1, 64, 9, 9), dtype=jnp.float32)
    w3 = 0.02 * jax.random.normal(kw3, (32, 64, 4, 4), dtype=jnp.float32)
    y3 = jax.block_until_ready(downsample(x3, w3, compute_dtype=jnp.float32))
    y3_ref = _reference(x3, w3)
    assert y3.shape == y3_ref.shape, (y3.shape, y3_ref.shape)
    assert jnp.allclose(y3, y3_ref, atol=5e-3, rtol=5e-3), \
        float(jnp.max(jnp.abs(y3 - y3_ref)))

    print("KERNEL_OK")
</pallas_src>

<mosaic_0001>
module attributes {stable_mosaic.version = 11 : i64} {
  func.func @_conv4x4s2_lrelu_kernel(%arg0: i32, %arg1: i32, %arg2: memref<1x16x128xbf16, #tpu.memory_space<vmem>>, %arg3: memref<8x64xbf16, #tpu.memory_space<vmem>>, %arg4: memref<1x8x128xf32, #tpu.memory_space<vmem>>) attributes {dimension_semantics = [#tpu.dimension_semantics<parallel>, #tpu.dimension_semantics<parallel>], iteration_bounds = array<i64: 2, 1>, scalar_prefetch = 0 : i64, scratch_operands = 0 : i64, tpu.core_type = #tpu.core_type<tc>, window_params = [{transform_indices = @transform_0, window_bounds = array<i64: 1, 16, 128>}, {pipeline_mode = #tpu.pipeline_mode<synchronous>, transform_indices = @transform_1, window_bounds = array<i64: 8, 64>}, {transform_indices = @transform_2, window_bounds = array<i64: 1, 8, 128>}]} {
    %c0 = arith.constant 0 : index
    %c0_0 = arith.constant 0 : index
    %c0_1 = arith.constant 0 : index
    %0 = vector.load %arg2[%c0, %c0_0, %c0_1] : memref<1x16x128xbf16, #tpu.memory_space<vmem>>, vector<1x16x72xbf16>
    %1 = vector.shape_cast %0 : vector<1x16x72xbf16> to vector<16x72xbf16>
    %c0_2 = arith.constant 0 : index
    %c0_3 = arith.constant 0 : index
    %c1 = arith.constant 1 : index
    %2 = vector.load %arg2[%c0_2, %c0_3, %c1] : memref<1x16x128xbf16, #tpu.memory_space<vmem>>, vector<1x16x72xbf16>
    %3 = vector.shape_cast %2 : vector<1x16x72xbf16> to vector<16x72xbf16>
    %c0_4 = arith.constant 0 : index
    %c0_5 = arith.constant 0 : index
    %c9 = arith.constant 9 : index
    %4 = vector.load %arg2[%c0_4, %c0_5, %c9] : memref<1x16x128xbf16, #tpu.memory_space<vmem>>, vector<1x16x72xbf16>
    %5 = vector.shape_cast %4 : vector<1x16x72xbf16> to vector<16x72xbf16>
    %c0_6 = arith.constant 0 : index
    %c0_7 = arith.constant 0 : index
    %c10 = arith.constant 10 : index
    %6 = vector.load %arg2[%c0_6, %c0_7, %c10] : memref<1x16x128xbf16, #tpu.memory_space<vmem>>, vector<1x16x72xbf16>
    %7 = vector.shape_cast %6 : vector<1x16x72xbf16> to vector<16x72xbf16>
    %8 = tpu.concatenate %1, %3, %5, %7 in 0 : vector<16x72xbf16>, vector<16x72xbf16>, vector<16x72xbf16>, vector<16x72xbf16> -> vector<64x72xbf16>
    %c0_8 = arith.constant 0 : index
    %c0_9 = arith.constant 0 : index
    %9 = vector.load %arg3[%c0_8, %c0_9] : memref<8x64xbf16, #tpu.memory_space<vmem>>, vector<8x64xbf16>
    %cst = arith.constant dense<0.000000e+00> : vector<8x72xf32>
    %10 = tpu.matmul %9, %8, %cst {dimension_numbers = #tpu.dot_dimension_numbers<[1], [0], [0], [1], [0, 0, 1, 1], [], []>} : vector<8x64xbf16>, vector<64x72xbf16>, vector<8x72xf32> -> vector<8x72xf32>
    %cst_10 = arith.constant 0.000000e+00 : f32
    %11 = vector.broadcast %cst_10 : f32 to vector<8x72xf32>
    %12 = arith.cmpf oge, %10, %11 : vector<8x72xf32>
    %cst_11 = arith.constant 2.000000e-01 : f32
    %13 = vector.broadcast %cst_11 : f32 to vector<8x72xf32>
    %14 = arith.mulf %13, %10 : vector<8x72xf32>
    %15 = arith.select %12, %10, %14 : vector<8x72xi1>, vector<8x72xf32>
    %c0_12 = arith.constant 0 : index
    %c0_13 = arith.constant 0 : index
    %c0_14 = arith.constant 0 : index
    %16 = vector.load %arg4[%c0_12, %c0_13, %c0_14] : memref<1x8x128xf32, #tpu.memory_space<vmem>>, vector<1x8x72xf32>
    %17 = vector.shape_cast %16 : vector<1x8x72xf32> to vector<8x72xf32>
    %18 = vector.shape_cast %15 : vector<8x72xf32> to vector<1x8x72xf32>
    tpu.vector_store %arg4[%c0_12, %c0_13, %c0_14], %18 {strides = array<i32>} : memref<1x8x128xf32, #tpu.memory_space<vmem>>, vector<1x8x72xf32>,
    return
  }
  func.func @transform_0(%arg0: i32, %arg1: i32) -> (i32, i32, i32) {
    %c0_i32 = arith.constant 0 : i32
    %c0_i32_0 = arith.constant 0 : i32
    return %arg0, %c0_i32, %arg1 : i32, i32, i32
  }
  func.func @transform_1(%arg0: i32, %arg1: i32) -> (i32, i32) {
    %c0_i32 = arith.constant 0 : i32
    %c0_i32_0 = arith.constant 0 : i32
    %c0_i32_1 = arith.constant 0 : i32
    return %c0_i32, %c0_i32_0 : i32, i32
  }
  func.func @transform_2(%arg0: i32, %arg1: i32) -> (i32, i32, i32) {
    %c0_i32 = arith.constant 0 : i32
    %c0_i32_0 = arith.constant 0 : i32
    return %arg0, %c0_i32, %arg1 : i32, i32, i32
  }
}

</mosaic_0001>

<llo_original>
// kernel: _lambda_.1
$region0: #{_lambda_.1}
  #allocation0 [shape = 'u32[]', space=smem, size = 0x4, offset = 0x4, fixed_abs, tag = 'smem constant byte address 0x4 - core index']
  #allocation1 [shape = 'u32[72,128]{1,0:T(1,128)}', space=vmem, size = 0x9000, scoped, tag = 'internal scratch']
  %s0 = inlined_call_operand.vmem [shape: bf16[2,16,128], index: 0, kind: input, shape index: {}]
  %s1 = inlined_call_operand.vmem [shape: bf16[8,64], index: 1, kind: input, shape index: {}]
  %s2 = inlined_call_operand.vmem [shape: f32[2,8,128], index: 2, kind: output, shape index: {}]
  %s3 = sld [smem:[#allocation0]]
  $region41: #{_lambda_.1} parent=0
    _
  %s5 = ssub.s32 1, %s3
  %s6 = scalar_select 0, %s5, %s3
  loop: start=0, step=1, limit=4
  $region2: #{_lambda_.1} parent=0 // loop_pre_header
    _
  $region3: #{_lambda_.1} parent=0 // loop_header
    %s8 = sphi 0, %s12
    %p9 = scmp.ge.s32.totalorder %s8, 4
    %s15 = sphi 0, %s27
    %s16 = sphi 0, %s23
    %s17 = sphi 0, %s15
    %s18 = sphi 0, %s16
    %s19 = sphi 0, %s17
    %s20 = sphi 0, %s18
    %s32 = sphi 0, %s34
    %s35 = sphi 0, %s32
    %s36 = sphi 0, %s35
    %s52 = sphi 0, %s36
    %s56 = sphi 0, %s56
    %s58 = sphi 0, %s56
    %s59 = sphi 0, %s58
    %s73 = sphi 0, %s59
    %s81 = sphi 0, %s83
    %s84 = sphi 0, %s81
    %s85 = sphi 0, %s84
    %s101 = sphi 0, %s85
  $region4: #{_lambda_.1} parent=0 // loop_header_branch
    %11 = sbr.rel (%p9) target = $region8
  $region5: #{_lambda_.1} parent=0 // loop_body
    %s13 = ssub.s32 %s8, 1
    %s14 = ssub.s32 %s8, 2
    %s21 = sadd.s32 1, %s16
    %p22 = scmp.ge.s32.totalorder %s21, 1
    %s23 = scalar_select %p22, 0, %s21
    %s24 = sadd.s32 1, %s15
    %s25 = scalar_select %p22, %s24, %s15
    %p26 = scmp.ge.s32.totalorder %s25, 2
    %s27 = scalar_select %p26, 0, %s25
    %s28 = ssub.s32 %s15, %s27
    %s29 = ssub.s32 %s16, %s23
    %s30 = sor.u32 %s28, %s29
    %p31 = scmp.eq.s32.totalorder %s30, 0
    %s33 = sadd.s32 %s32, 1
    %s34 = scalar_select %p31, %s32, %s33
    %p37 = pneg %p31
    %p38 = scmp.eq.s32.totalorder %s8, 1
    %p39 = por %p37, %p38
    %p40 = scmp.ne.s32.totalorder %s32, %s35
    %p41 = scmp.eq.s32.totalorder %s8, 0
    %p42 = por %p40, %p41
    %p43 = scmp.ne.s32.totalorder %s32, %s35
    %p44 = scmp.eq.s32.totalorder %s13, 1
    %p45 = por %p43, %p44
    %p46 = scmp.ne.s32.totalorder %s35, %s36
    %p47 = scmp.eq.s32.totalorder %s13, 0
    %p48 = por %p46, %p47
    %p49 = scmp.ne.s32.totalorder %s35, %s36
    %p50 = scmp.eq.s32.totalorder %s14, 1
    %p51 = por %p49, %p50
    %p53 = scmp.ne.s32.totalorder %s36, %s52
    %p54 = scmp.eq.s32.totalorder %s14, 0
    %p55 = por %p53, %p54
    %s57 = sadd.s32 %s56, 1
    %p60 = scmp.eq.s32.totalorder %s8, 1
    %p61 = scmp.ne.s32.totalorder %s56, %s58
    %p62 = scmp.eq.s32.totalorder %s8, 0
    %p63 = por %p61, %p62
    %p64 = scmp.ne.s32.totalorder %s56, %s58
    %p65 = scmp.eq.s32.totalorder %s13, 1
    %p66 = por %p64, %p65
    %p67 = scmp.ne.s32.totalorder %s58, %s59
    %p68 = scmp.eq.s32.totalorder %s13, 0
    %p69 = por %p67, %p68
    %p70 = scmp.ne.s32.totalorder %s58, %s59
    %p71 = scmp.eq.s32.totalorder %s14, 1
    %p72 = por %p70, %p71
    %p74 = scmp.ne.s32.totalorder %s59, %s73
    %p75 = scmp.eq.s32.totalorder %s14, 0
    %p76 = por %p74, %p75
    %s77 = ssub.s32 %s15, %s27
    %s78 = ssub.s32 %s16, %s23
    %s79 = sor.u32 %s77, %s78
    %p80 = scmp.eq.s32.totalorder %s79, 0
    %s82 = sadd.s32 %s81, 1
    %s83 = scalar_select %p80, %s81, %s82
    %p86 = pneg %p80
    %p87 = scmp.eq.s32.totalorder %s8, 1
    %p88 = por %p86, %p87
    %p89 = scmp.ne.s32.totalorder %s81, %s84
    %p90 = scmp.eq.s32.totalorder %s8, 0
    %p91 = por %p89, %p90
    %p92 = scmp.ne.s32.totalorder %s81, %s84
    %p93 = scmp.eq.s32.totalorder %s13, 1
    %p94 = por %p92, %p93
    %p95 = scmp.ne.s32.totalorder %s84, %s85
    %p96 = scmp.eq.s32.totalorder %s13, 0
    %p97 = por %p95, %p96
    %p98 = scmp.ne.s32.totalorder %s84, %s85
    %p99 = scmp.eq.s32.totalorder %s14, 1
    %p100 = por %p98, %p99
    %p102 = scmp.ne.s32.totalorder %s85, %s101
    %p103 = scmp.eq.s32.totalorder %s14, 0
    %p104 = por %p102, %p103
    %p105 = scmp.le.s32.totalorder 1, %s8
    %p106 = scmp.lt.s32.totalorder %s8, 3
    %p107 = pnand %p105, %p106
    %p108 = pneg %p107
    // Predicated region
    $region9: #{_lambda_.1} parent=5 // pred_check
      _
    $region10: #{_lambda_.1} parent=5 // pred_check_branch
      %110 = sbr.rel (%p107) target = $region12
    $region11: #{_lambda_.1} parent=5 // pred_region
      %s111 = ssub.s32 %s8, 1
      // Predicated region
      $region13: #{_lambda_.1} parent=11 // pred_check
        %p112 = pneg %p69
      $region14: #{_lambda_.1} parent=11 // pred_check_branch
        %114 = sbr.rel (%p112) target = $region16
      $region15: #{_lambda_.1} parent=11 // pred_region
        _
      $region16: #{_lambda_.1} parent=11 // pred_fallthru
        _
    $region12: #{_lambda_.1} parent=5 // pred_fallthru
      _
    %p115 = scmp.lt.s32.totalorder %s8, 2
    // Predicated region
    $region17: #{_lambda_.1} parent=5 // pred_check
      %p116 = pneg %p115
    $region18: #{_lambda_.1} parent=5 // pred_check_branch
      %118 = sbr.rel (%p116) target = $region20
    $region19: #{_lambda_.1} parent=5 // pred_region
      // Predicated region
      $region21: #{_lambda_.1} parent=19 // pred_check
        %p119 = pneg %p42
      $region22: #{_lambda_.1} parent=19 // pred_check_branch
        %121 = sbr.rel (%p119) target = $region24
      $region23: #{_lambda_.1} parent=19 // pred_region
        %p122 = scmp.lt.s32.totalorder %s15, 1
        %s123 = scalar_select %p122, %s15, 1
        %p124 = scmp.lt.s32.totalorder %s16, 0
        %s125 = scalar_select %p124, %s16, 0
        %s126 = smul.addr %s123, 2
        %s127 = sadd.s32 %s125, %s126
        %s128 = smul.addr %s127, 4
        %s129 = scalar_lea.vmem %s0, %s128
      $region24: #{_lambda_.1} parent=19 // pred_fallthru
        _
    $region20: #{_lambda_.1} parent=5 // pred_fallthru
      _
    %p130 = scmp.le.s32.totalorder 1, %s8
    %p131 = scmp.lt.s32.totalorder %s8, 3
    %p132 = pnand %p130, %p131
    %p133 = pneg %p132
    // Predicated region
    $region25: #{_lambda_.1} parent=5 // pred_check
      _
    $region26: #{_lambda_.1} parent=5 // pred_check_branch
      %135 = sbr.rel (%p132) target = $region28
    $region27: #{_lambda_.1} parent=5 // pred_region
      %s136 = ssub.s32 %s8, 1
      %p137 = scmp.lt.s32.totalorder %s17, 1
      %s138 = scalar_select %p137, %s17, 1
      %p139 = scmp.lt.s32.totalorder %s18, 0
      %s140 = scalar_select %p139, %s18, 0
      %s141 = smul.addr %s138, 2
      %s142 = sadd.s32 %s140, %s141
      %s143 = smul.addr %s142, 4
      %s144 = scalar_lea.vmem %s0, %s143
      %p145 = pneg %p48
      %p146 = pneg %p45
      %p147 = pneg %p69
      %p148 = pneg %p66
      %p149 = pneg %p97
      %p150 = pneg %p94
      %p151 = scmp.lt.s32.totalorder %s17, 1
      %s152 = scalar_select %p151, %s17, 1
      %p153 = scmp.lt.s32.totalorder %s18, 0
      %s154 = scalar_select %p153, %s18, 0
      %s155 = sadd.s32 %s154, %s152
      %s156 = smul.addr %s155, 8
      %s157 = scalar_lea.vmem %s2, %s156
      %p158 = scmp.lt.s32.totalorder %s17, 1
      %s159 = scalar_select %p158, %s17, 1
      %p160 = scmp.lt.s32.totalorder %s18, 0
      %s161 = scalar_select %p160, %s18, 0
      %s162 = smul.addr %s159, 2
      %s163 = sadd.s32 %s161, %s162
      %s164 = smul.addr %s163, 4
      %s165 = scalar_lea.vmem %s0, %s164
      %p166 = scmp.lt.s32.totalorder %s17, 1
      %s167 = scalar_select %p166, %s17, 1
      %p168 = scmp.lt.s32.totalorder %s18, 0
      %s169 = scalar_select %p168, %s18, 0
      %s170 = sadd.s32 %s169, %s167
      %s171 = smul.addr %s170, 8
      %s172 = scalar_lea.vmem %s2, %s171
      %v174 = vld [vmem:[%s165] sm:$0xf]
      %v175 = vld [vmem:[%s165 + $0x4] sm:$0xf]
      %v178 = vunpack.c.l.b16 %v174
      %v179 = vunpack.c.l.b16 %v175
      %v180 = vpack.c.b16 %v179, %v178
      %182 = vrot.lane.b32.xlu0 %v180, 127
      %v183 = vpop.permute.xlu0 %182
      %185 = vrot.lane.b32.xlu0 %v180, 119
      %v186 = vpop.permute.xlu0 %185
      %188 = vrot.lane.b32.xlu0 %v180, 118
      %v189 = vpop.permute.xlu0 %188
      %v191 = vld [vmem:[%s1] sm:$0xf]
      %vm192 = vcmask 523264
      %v194 = vsel %vm192, %v191, 0
      %196 = vmatpush.bf16.msra.mxu0 0
      %197 = vmatpush.bf16.msra.mxu0 0
      %198 = vmatpush.bf16.msra.mxu0 0
      %199 = vmatpush.bf16.msra.mxu0 0
      %200 = vmatpush.bf16.msra.mxu0 %v189
      %201 = vmatpush.bf16.msra.mxu0 %v186
      %202 = vmatpush.bf16.msra.mxu0 %v183
      %203 = vmatpush.bf16.msra.mxu0 %v180
      %204 = vmatmul.bf16.gmra.mxu0 %v194
      %v205 = vpop.f32.mrf.mxu0
      %v206 = vadd.f32 0.0, %v205
      %v207 = vpop.f32.mrf.mxu0
      %208 = vdwg.mxu0
      %vm209 = vcmp.ge.f32.partialorder %v206, 0.0
      %v210 = vmul.f32 %v206, 0.2
      %v211 = vsel %vm209, %v206, %v210
      %vm212 = vcmask 588800
      %213 = vst.msk [vmem:[%s172] sm:$0xff] %vm212, %v211
      %p214 = scmp.lt.s32.totalorder %s17, 1
      %s215 = scalar_select %p214, %s17, 1
      %p216 = scmp.lt.s32.totalorder %s18, 0
      %s217 = scalar_select %p216, %s18, 0
      %s218 = sadd.s32 %s217, %s215
      %s219 = smul.addr %s218, 8
      %s220 = scalar_lea.vmem %s2, %s219
      // Predicated region
      $region29: #{_lambda_.1} parent=27 // pred_check
        %p221 = pneg %p94
      $region30: #{_lambda_.1} parent=27 // pred_check_branch
        %223 = sbr.rel (%p221) target = $region32
      $region31: #{_lambda_.1} parent=27 // pred_region
        _
      $region32: #{_lambda_.1} parent=27 // pred_fallthru
        _
    $region28: #{_lambda_.1} parent=5 // pred_fallthru
      _
    %p224 = scmp.le.s32.totalorder 2, %s8
    // Predicated region
    $region33: #{_lambda_.1} parent=5 // pred_check
      %p225 = pneg %p224
    $region34: #{_lambda_.1} parent=5 // pred_check_branch
      %227 = sbr.rel (%p225) target = $region36
    $region35: #{_lambda_.1} parent=5 // pred_region
      %s228 = ssub.s32 %s8, 2
      // Predicated region
      $region37: #{_lambda_.1} parent=35 // pred_check
        %p229 = pneg %p100
      $region38: #{_lambda_.1} parent=35 // pred_check_branch
        %231 = sbr.rel (%p229) target = $region40
      $region39: #{_lambda_.1} parent=35 // pred_region
        %p232 = scmp.lt.s32.totalorder %s19, 1
        %s233 = scalar_select %p232, %s19, 1
        %p234 = scmp.lt.s32.totalorder %s20, 0
        %s235 = scalar_select %p234, %s20, 0
        %s236 = sadd.s32 %s235, %s233
        %s237 = smul.addr %s236, 8
        %s238 = scalar_lea.vmem %s2, %s237
      $region40: #{_lambda_.1} parent=35 // pred_fallthru
        _
    $region36: #{_lambda_.1} parent=5 // pred_fallthru
      _
  $region6: #{_lambda_.1} parent=0 // loop_footer
    %s12 = sadd.s32 1, %s8
  $region7: #{_lambda_.1} parent=0 // loop_footer_branch
    %7 = sbr.rel target = $region3
  $region8: #{_lambda_.1} parent=0 // loop_exit
    _

</llo_original>
